<compile_context>
chip_gen: v6e
topology: v6e:2x2x1
jax: 0.10.0
libtpu: 0.0.40
codegen_flags: <defaults>
</compile_context>

<pallas_src>
import math

import jax
import jax.numpy as jnp
import numpy as np
from jax.experimental import pallas as pl
from jax.experimental.pallas import tpu as pltpu

# ----------------------------- configuration --------------------------------
C_IN = 4       # input image channels
C_HID = 32     # hidden channels of the 1x1-conv "backbone"
N_CLS = 8      # heatmap classes (model output channels)
MAX_TL = 4096  # max pixels (lanes) per grid step

# CenterNet _sigmoid clamp constants and derived log / logit thresholds.
_LO = 1e-4
_HI = 1.0 - 1e-4
_LOG_LO = math.log(_LO)          # log(1e-4)
_LOG_HI = math.log(_HI)          # log(1 - 1e-4)
_Z_HI = math.log(_HI / _LO)      # logit(1 - 1e-4) ~ +9.2102
_Z_LO = -_Z_HI                   # logit(1e-4)     ~ -9.2102


def _choose_tile(hw, max_tl=MAX_TL):
    """Largest multiple of 128 that divides H*W and is <= max_tl."""
    best = 0
    t = 128
    while t <= min(hw, max_tl):
        if hw % t == 0:
            best = t
        t += 128
    if best == 0:
        raise ValueError("H*W must be a multiple of 128 for this kernel")
    return best


# ------------------------------- kernel -------------------------------------
def _fused_model_loss_kernel(x_ref, gt_ref, w1_ref, b1_ref, w2_ref, b2_ref,
                             pos_ref, neg_ref, npos_ref,
                             acc_pos, acc_neg, acc_npos):
    """Grid = (batch, pixel_tiles). One step processes TL pixels of one image in
    channels-on-sublanes / pixels-on-lanes layout, fusing
    matmul -> relu -> matmul -> sigmoid -> focal-loss terms, and accumulates the
    loss terms elementwise into lane-dense VMEM scratch. The scalar reduction and
    output store happen once per image in the epilogue."""
    p = pl.program_id(1)

    @pl.when(p == 0)
    def _init():
        acc_pos[...] = jnp.zeros_like(acc_pos)
        acc_neg[...] = jnp.zeros_like(acc_neg)
        acc_npos[...] = jnp.zeros_like(acc_npos)

    # --- model: per-pixel MLP (== two 1x1 convs with ReLU), transposed layout ---
    x = x_ref[0].astype(jnp.float32)                                   # (C_IN, TL)
    h = jnp.dot(w1_ref[...], x, preferred_element_type=jnp.float32)    # (C_HID, TL)
    h = jnp.maximum(h + b1_ref[...], 0.0)
    z = jnp.dot(w2_ref[...], h, preferred_element_type=jnp.float32)    # (N_CLS, TL)
    z = z + b2_ref[...]

    # --- CenterNet _sigmoid: clamp(sigmoid(z), 1e-4, 1 - 1e-4) ---
    pred = jnp.clip(jax.nn.sigmoid(z), _LO, _HI)                       # (N_CLS, TL)
    log_pred = jnp.log(pred)
    # log(1 - pred) via log-sigmoid identity: log(1 - sig(z)) = log(sig(z)) - z,
    # clamp region handled explicitly (saves one EUP log per element).
    log_1m_pred = jnp.where(z > _Z_HI, _LOG_LO,
                            jnp.where(z < _Z_LO, _LOG_HI, log_pred - z))

    # --- CenterNet focal loss (_neg_loss) elementwise terms ---
    gt = gt_ref[0].astype(jnp.float32)                                 # (N_CLS, TL)
    pos_mask = (gt == 1.0).astype(jnp.float32)
    neg_mask = 1.0 - pos_mask
    omg = 1.0 - gt
    neg_w = omg * omg
    neg_w = neg_w * neg_w                                              # (1 - gt) ** 4
    omp = 1.0 - pred

    acc_pos[...] += log_pred * (omp * omp) * pos_mask
    acc_neg[...] += log_1m_pred * (pred * pred) * neg_w * neg_mask
    acc_npos[...] += pos_mask

    # --- epilogue: one reduction per image, lane-dense splat store ---
    @pl.when(p == pl.num_programs(1) - 1)
    def _fin():
        pos_ref[...] = jnp.broadcast_to(jnp.sum(acc_pos[...]), pos_ref.shape)
        neg_ref[...] = jnp.broadcast_to(jnp.sum(acc_neg[...]), neg_ref.shape)
        npos_ref[...] = jnp.broadcast_to(jnp.sum(acc_npos[...]), npos_ref.shape)


# ------------------------------- wrapper -------------------------------------
def init_params(key):
    """Deterministic synthetic parameters for the two 1x1 convs."""
    k1, k2 = jax.random.split(key)
    w1 = jax.random.normal(k1, (C_IN, C_HID), jnp.float32) * 0.3
    b1 = jnp.zeros((1, C_HID), jnp.float32)
    w2 = jax.random.normal(k2, (C_HID, N_CLS), jnp.float32) * 0.1
    # CenterNet heatmap-head bias init: -2.19 (prior prob ~0.1)
    b2 = jnp.full((1, N_CLS), -2.19, jnp.float32)
    return w1, b1, w2, b2


@jax.jit
def model_with_loss(img, target, w1, b1, w2, b2):
    """Equivalent of ModelWithLoss.forward(img, target) -> (loss, loss_stats).

    img    : (N, C_IN, H, W)   float32, NCHW (PyTorch convention)
    target : (N, N_CLS, H, W)  float32 heatmap ground truth in [0, 1]
    """
    n, cin, hgt, wid = img.shape
    hw = hgt * wid
    tl = _choose_tile(hw)
    n_p = hw // tl

    # NCHW consumed directly: reshape only (free), no transpose / extra HBM pass.
    x = img.reshape(n, cin, hw)
    gt = target.reshape(n, N_CLS, hw)

    # Weights in "channels-out on sublanes" orientation for the (C, TL) layout.
    w1t = w1.T                        # (C_HID, C_IN)
    w2t = w2.T                        # (N_CLS, C_HID)
    b1c = b1.reshape(C_HID, 1)
    b2c = b2.reshape(N_CLS, 1)

    out_shape = tuple(jax.ShapeDtypeStruct((1, n * 128), jnp.float32)
                      for _ in range(3))
    out_spec = pl.BlockSpec((1, 128), lambda b, p: (0, b))   # per-image lane block

    pos_o, neg_o, npos_o = pl.pallas_call(
        _fused_model_loss_kernel,
        out_shape=out_shape,
        grid_spec=pltpu.PrefetchScalarGridSpec(
            num_scalar_prefetch=0,
            grid=(n, n_p),
            in_specs=[
                pl.BlockSpec((1, cin, tl), lambda b, p: (b, 0, p)),    # x tile
                pl.BlockSpec((1, N_CLS, tl), lambda b, p: (b, 0, p)),  # gt tile
                pl.BlockSpec((C_HID, C_IN), lambda b, p: (0, 0)),      # w1^T (resident)
                pl.BlockSpec((C_HID, 1), lambda b, p: (0, 0)),         # b1
                pl.BlockSpec((N_CLS, C_HID), lambda b, p: (0, 0)),     # w2^T
                pl.BlockSpec((N_CLS, 1), lambda b, p: (0, 0)),         # b2
            ],
            out_specs=[out_spec, out_spec, out_spec],
            scratch_shapes=[
                pltpu.VMEM((N_CLS, tl), jnp.float32),   # acc_pos
                pltpu.VMEM((N_CLS, tl), jnp.float32),   # acc_neg
                pltpu.VMEM((N_CLS, tl), jnp.float32),   # acc_npos
            ],
        ),
        compiler_params=pltpu.CompilerParams(
            dimension_semantics=("parallel", "arbitrary")),
    )(x, gt, w1t, b1c, w2t, b2c)

    pos = pos_o.reshape(n, 128)[:, 0].sum()
    neg = neg_o.reshape(n, 128)[:, 0].sum()
    npos = npos_o.reshape(n, 128)[:, 0].sum()

    # CenterNet _neg_loss final combination.
    loss = jnp.where(npos > 0.0,
                     -(pos + neg) / jnp.maximum(npos, 1.0),
                     -neg)
    loss_stats = {"loss": loss, "hm_loss": loss}
    return loss, loss_stats


# ----------------------------- pure-JAX reference ----------------------------
def _reference_loss(img, target, w1, b1, w2, b2):
    n, cin, hgt, wid = img.shape
    x = jnp.transpose(img, (0, 2, 3, 1)).reshape(-1, cin)
    gt = jnp.transpose(target, (0, 2, 3, 1)).reshape(-1, N_CLS)
    h = jnp.maximum(x @ w1 + b1, 0.0)
    logits = h @ w2 + b2
    pred = jnp.clip(jax.nn.sigmoid(logits), 1e-4, 1.0 - 1e-4)
    pos_mask = (gt == 1.0).astype(jnp.float32)
    neg_mask = 1.0 - pos_mask
    neg_w = (1.0 - gt) ** 4
    pos_loss = jnp.sum(jnp.log(pred) * (1.0 - pred) ** 2 * pos_mask)
    neg_loss = jnp.sum(jnp.log(1.0 - pred) * pred ** 2 * neg_w * neg_mask)
    npos = jnp.sum(pos_mask)
    return jnp.where(npos > 0.0,
                     -(pos_loss + neg_loss) / jnp.maximum(npos, 1.0),
                     -neg_loss)


# --------------------------------- main --------------------------------------
if __name__ == "__main__":
    key = jax.random.PRNGKey(0)
    k_img, k_tgt, k_params = jax.random.split(key, 3)

    N, H, W = 2, 16, 16
    img = jax.random.normal(k_img, (N, C_IN, H, W), jnp.float32)

    # Synthetic heatmap target in [0, 1) with some exact-1.0 positive peaks.
    raw = jax.random.uniform(k_tgt, (N, N_CLS, H, W), jnp.float32)
    target = jnp.where(raw > 0.98, 1.0, raw * 0.9)

    w1, b1, w2, b2 = init_params(k_params)

    loss, loss_stats = model_with_loss(img, target, w1, b1, w2, b2)
    jax.block_until_ready(loss)
    jax.block_until_ready(loss_stats["hm_loss"])

    ref = _reference_loss(img, target, w1, b1, w2, b2)
    np.testing.assert_allclose(np.asarray(loss), np.asarray(ref),
                               rtol=2e-3, atol=2e-3)

    print("KERNEL_OK")
</pallas_src>

<mosaic_0001>
module attributes {stable_mosaic.version = 11 : i64} {
  func.func @_fused_model_loss_kernel(%arg0: i32, %arg1: i32, %arg2: memref<1x4x256xf32, #tpu.memory_space<vmem>>, %arg3: memref<1x8x256xf32, #tpu.memory_space<vmem>>, %arg4: memref<32x4xf32, #tpu.memory_space<vmem>>, %arg5: memref<32x1xf32, #tpu.memory_space<vmem>>, %arg6: memref<8x32xf32, #tpu.memory_space<vmem>>, %arg7: memref<8x1xf32, #tpu.memory_space<vmem>>, %arg8: memref<1x128xf32, #tpu.memory_space<vmem>>, %arg9: memref<1x128xf32, #tpu.memory_space<vmem>>, %arg10: memref<1x128xf32, #tpu.memory_space<vmem>>, %arg11: memref<8x256xf32, #tpu.memory_space<vmem>>, %arg12: memref<8x256xf32, #tpu.memory_space<vmem>>, %arg13: memref<8x256xf32, #tpu.memory_space<vmem>>) attributes {dimension_semantics = [#tpu.dimension_semantics<parallel>, #tpu.dimension_semantics<arbitrary>], iteration_bounds = array<i64: 2, 1>, scalar_prefetch = 0 : i64, scratch_operands = 3 : i64, tpu.core_type = #tpu.core_type<tc>, window_params = [{transform_indices = @transform_0, window_bounds = array<i64: 1, 4, 256>}, {transform_indices = @transform_1, window_bounds = array<i64: 1, 8, 256>}, {pipeline_mode = #tpu.pipeline_mode<synchronous>, transform_indices = @transform_2, window_bounds = array<i64: 32, 4>}, {pipeline_mode = #tpu.pipeline_mode<synchronous>, transform_indices = @transform_3, window_bounds = array<i64: 32, 1>}, {pipeline_mode = #tpu.pipeline_mode<synchronous>, transform_indices = @transform_4, window_bounds = array<i64: 8, 32>}, {pipeline_mode = #tpu.pipeline_mode<synchronous>, transform_indices = @transform_5, window_bounds = array<i64: 8, 1>}, {transform_indices = @transform_6, window_bounds = array<i64: 1, 128>}, {transform_indices = @transform_7, window_bounds = array<i64: 1, 128>}, {transform_indices = @transform_8, window_bounds = array<i64: 1, 128>}]} {
    %c0_i32 = arith.constant 0 : i32
    %0 = arith.cmpi eq, %arg1, %c0_i32 : i32
    %1 = arith.extui %0 : i1 to i32
    %c0_i32_0 = arith.constant 0 : i32
    %2 = arith.cmpi ne, %1, %c0_i32_0 : i32
    scf.if %2 {
      %cst_41 = arith.constant 0.000000e+00 : f32
      %69 = vector.broadcast %cst_41 : f32 to vector<8x256xf32>
      %c0_42 = arith.constant 0 : index
      %c0_43 = arith.constant 0 : index
      %70 = vector.load %arg11[%c0_42, %c0_43] : memref<8x256xf32, #tpu.memory_space<vmem>>, vector<8x256xf32>
      tpu.vector_store %arg11[%c0_42, %c0_43], %69 {strides = array<i32>} : memref<8x256xf32, #tpu.memory_space<vmem>>, vector<8x256xf32>,
      %cst_44 = arith.constant 0.000000e+00 : f32
      %71 = vector.broadcast %cst_44 : f32 to vector<8x256xf32>
      %c0_45 = arith.constant 0 : index
      %c0_46 = arith.constant 0 : index
      %72 = vector.load %arg12[%c0_45, %c0_46] : memref<8x256xf32, #tpu.memory_space<vmem>>, vector<8x256xf32>
      tpu.vector_store %arg12[%c0_45, %c0_46], %71 {strides = array<i32>} : memref<8x256xf32, #tpu.memory_space<vmem>>, vector<8x256xf32>,
      %cst_47 = arith.constant 0.000000e+00 : f32
      %73 = vector.broadcast %cst_47 : f32 to vector<8x256xf32>
      %c0_48 = arith.constant 0 : index
      %c0_49 = arith.constant 0 : index
      %74 = vector.load %arg13[%c0_48, %c0_49] : memref<8x256xf32, #tpu.memory_space<vmem>>, vector<8x256xf32>
      tpu.vector_store %arg13[%c0_48, %c0_49], %73 {strides = array<i32>} : memref<8x256xf32, #tpu.memory_space<vmem>>, vector<8x256xf32>,
    } else {
    }
    %c0 = arith.constant 0 : index
    %c0_1 = arith.constant 0 : index
    %c0_2 = arith.constant 0 : index
    %3 = vector.load %arg2[%c0, %c0_1, %c0_2] : memref<1x4x256xf32, #tpu.memory_space<vmem>>, vector<1x4x256xf32>
    %4 = vector.shape_cast %3 : vector<1x4x256xf32> to vector<4x256xf32>
    %c0_3 = arith.constant 0 : index
    %c0_4 = arith.constant 0 : index
    %5 = vector.load %arg4[%c0_3, %c0_4] : memref<32x4xf32, #tpu.memory_space<vmem>>, vector<32x4xf32>
    %cst = arith.constant dense<0.000000e+00> : vector<32x256xf32>
    %6 = tpu.matmul %5, %4, %cst {dimension_numbers = #tpu.dot_dimension_numbers<[1], [0], [0], [1], [0, 0, 1, 1], [], []>} : vector<32x4xf32>, vector<4x256xf32>, vector<32x256xf32> -> vector<32x256xf32>
    %c0_5 = arith.constant 0 : index
    %c0_6 = arith.constant 0 : index
    %7 = vector.load %arg5[%c0_5, %c0_6] : memref<32x1xf32, #tpu.memory_space<vmem>>, vector<32x1xf32>
    %8 = vector.broadcast %7 : vector<32x1xf32> to vector<32x256xf32>
    %9 = arith.addf %6, %8 : vector<32x256xf32>
    %cst_7 = arith.constant 0.000000e+00 : f32
    %10 = vector.broadcast %cst_7 : f32 to vector<32x256xf32>
    %11 = arith.maximumf %9, %10 : vector<32x256xf32>
    %c0_8 = arith.constant 0 : index
    %c0_9 = arith.constant 0 : index
    %12 = vector.load %arg6[%c0_8, %c0_9] : memref<8x32xf32, #tpu.memory_space<vmem>>, vector<8x32xf32>
    %cst_10 = arith.constant dense<0.000000e+00> : vector<8x256xf32>
    %13 = tpu.matmul %12, %11, %cst_10 {dimension_numbers = #tpu.dot_dimension_numbers<[1], [0], [0], [1], [0, 0, 1, 1], [], []>} : vector<8x32xf32>, vector<32x256xf32>, vector<8x256xf32> -> vector<8x256xf32>
    %c0_11 = arith.constant 0 : index
    %c0_12 = arith.constant 0 : index
    %14 = vector.load %arg7[%c0_11, %c0_12] : memref<8x1xf32, #tpu.memory_space<vmem>>, vector<8x1xf32>
    %15 = vector.broadcast %14 : vector<8x1xf32> to vector<8x256xf32>
    %16 = arith.addf %13, %15 : vector<8x256xf32>
    %17 = arith.negf %16 : vector<8x256xf32>
    %18 = math.exp %17 : vector<8x256xf32>
    %cst_13 = arith.constant 1.000000e+00 : f32
    %19 = vector.broadcast %cst_13 : f32 to vector<8x256xf32>
    %20 = arith.addf %19, %18 : vector<8x256xf32>
    %21 = arith.divf %19, %20 : vector<8x256xf32>
    %cst_14 = arith.constant 9.99999974E-5 : f32
    %cst_15 = arith.constant 0.999899983 : f32
    %22 = vector.broadcast %cst_14 : f32 to vector<8x256xf32>
    %23 = arith.maximumf %22, %21 : vector<8x256xf32>
    %24 = vector.broadcast %cst_15 : f32 to vector<8x256xf32>
    %25 = arith.minimumf %24, %23 : vector<8x256xf32>
    %26 = math.log %25 : vector<8x256xf32>
    %cst_16 = arith.constant 9.210240e+00 : f32
    %27 = vector.broadcast %cst_16 : f32 to vector<8x256xf32>
    %28 = arith.cmpf ogt, %16, %27 : vector<8x256xf32>
    %cst_17 = arith.constant -9.210240e+00 : f32
    %29 = vector.broadcast %cst_17 : f32 to vector<8x256xf32>
    %30 = arith.cmpf olt, %16, %29 : vector<8x256xf32>
    %31 = arith.subf %26, %16 : vector<8x256xf32>
    %cst_18 = arith.constant -1.000050e-04 : f32
    %32 = vector.broadcast %cst_18 : f32 to vector<8x256xf32>
    %33 = arith.select %30, %32, %31 : vector<8x256xi1>, vector<8x256xf32>
    %cst_19 = arith.constant -9.21034049 : f32
    %34 = vector.broadcast %cst_19 : f32 to vector<8x256xf32>
    %35 = arith.select %28, %34, %33 : vector<8x256xi1>, vector<8x256xf32>
    %c0_20 = arith.constant 0 : index
    %c0_21 = arith.constant 0 : index
    %c0_22 = arith.constant 0 : index
    %36 = vector.load %arg3[%c0_20, %c0_21, %c0_22] : memref<1x8x256xf32, #tpu.memory_space<vmem>>, vector<1x8x256xf32>
    %37 = vector.shape_cast %36 : vector<1x8x256xf32> to vector<8x256xf32>
    %cst_23 = arith.constant 1.000000e+00 : f32
    %38 = vector.broadcast %cst_23 : f32 to vector<8x256xf32>
    %39 = arith.cmpf oeq, %37, %38 : vector<8x256xf32>
    %40 = arith.extui %39 : vector<8x256xi1> to vector<8x256xi32>
    %41 = arith.sitofp %40 : vector<8x256xi32> to vector<8x256xf32>
    %cst_24 = arith.constant 1.000000e+00 : f32
    %42 = vector.broadcast %cst_24 : f32 to vector<8x256xf32>
    %43 = arith.subf %42, %41 : vector<8x256xf32>
    %cst_25 = arith.constant 1.000000e+00 : f32
    %44 = vector.broadcast %cst_25 : f32 to vector<8x256xf32>
    %45 = arith.subf %44, %37 : vector<8x256xf32>
    %46 = arith.mulf %45, %45 : vector<8x256xf32>
    %47 = arith.mulf %46, %46 : vector<8x256xf32>
    %cst_26 = arith.constant 1.000000e+00 : f32
    %48 = vector.broadcast %cst_26 : f32 to vector<8x256xf32>
    %49 = arith.subf %48, %25 : vector<8x256xf32>
    %c0_27 = arith.constant 0 : index
    %c0_28 = arith.constant 0 : index
    %50 = vector.load %arg11[%c0_27, %c0_28] : memref<8x256xf32, #tpu.memory_space<vmem>>, vector<8x256xf32>
    %51 = arith.mulf %49, %49 : vector<8x256xf32>
    %52 = arith.mulf %26, %51 : vector<8x256xf32>
    %53 = arith.mulf %52, %41 : vector<8x256xf32>
    %54 = arith.addf %50, %53 : vector<8x256xf32>
    %c0_29 = arith.constant 0 : index
    %c0_30 = arith.constant 0 : index
    %55 = vector.load %arg11[%c0_29, %c0_30] : memref<8x256xf32, #tpu.memory_space<vmem>>, vector<8x256xf32>
    tpu.vector_store %arg11[%c0_29, %c0_30], %54 {strides = array<i32>} : memref<8x256xf32, #tpu.memory_space<vmem>>, vector<8x256xf32>,
    %c0_31 = arith.constant 0 : index
    %c0_32 = arith.constant 0 : index
    %56 = vector.load %arg12[%c0_31, %c0_32] : memref<8x256xf32, #tpu.memory_space<vmem>>, vector<8x256xf32>
    %57 = arith.mulf %25, %25 : vector<8x256xf32>
    %58 = arith.mulf %35, %57 : vector<8x256xf32>
    %59 = arith.mulf %58, %47 : vector<8x256xf32>
    %60 = arith.mulf %59, %43 : vector<8x256xf32>
    %61 = arith.addf %56, %60 : vector<8x256xf32>
    %c0_33 = arith.constant 0 : index
    %c0_34 = arith.constant 0 : index
    %62 = vector.load %arg12[%c0_33, %c0_34] : memref<8x256xf32, #tpu.memory_space<vmem>>, vector<8x256xf32>
    tpu.vector_store %arg12[%c0_33, %c0_34], %61 {strides = array<i32>} : memref<8x256xf32, #tpu.memory_space<vmem>>, vector<8x256xf32>,
    %c0_35 = arith.constant 0 : index
    %c0_36 = arith.constant 0 : index
    %63 = vector.load %arg13[%c0_35, %c0_36] : memref<8x256xf32, #tpu.memory_space<vmem>>, vector<8x256xf32>
    %64 = arith.addf %63, %41 : vector<8x256xf32>
    %c0_37 = arith.constant 0 : index
    %c0_38 = arith.constant 0 : index
    %65 = vector.load %arg13[%c0_37, %c0_38] : memref<8x256xf32, #tpu.memory_space<vmem>>, vector<8x256xf32>
    tpu.vector_store %arg13[%c0_37, %c0_38], %64 {strides = array<i32>} : memref<8x256xf32, #tpu.memory_space<vmem>>, vector<8x256xf32>,
    %c0_i32_39 = arith.constant 0 : i32
    %66 = arith.cmpi eq, %arg1, %c0_i32_39 : i32
    %67 = arith.extui %66 : i1 to i32
    %c0_i32_40 = arith.constant 0 : i32
    %68 = arith.cmpi ne, %67, %c0_i32_40 : i32
    scf.if %68 {
      %c0_41 = arith.constant 0 : index
      %c0_42 = arith.constant 0 : index
      %69 = vector.load %arg11[%c0_41, %c0_42] : memref<8x256xf32, #tpu.memory_space<vmem>>, vector<8x256xf32>
      %70 = vector.shape_cast %69 : vector<8x256xf32> to vector<1x8x256xf32>
      %cst_43 = arith.constant dense<0.000000e+00> : vector<1xf32>
      %71 = vector.multi_reduction <add>, %70, %cst_43 [1, 2] : vector<1x8x256xf32> to vector<1xf32>
      %72 = vector.shape_cast %71 : vector<1xf32> to vector<1x1x1xf32>
      %73 = vector.extract %72[0, 0, 0] : f32 from vector<1x1x1xf32>
      %74 = vector.broadcast %73 : f32 to vector<1x128xf32>
      %c0_44 = arith.constant 0 : index
      %c0_45 = arith.constant 0 : index
      %75 = vector.load %arg8[%c0_44, %c0_45] : memref<1x128xf32, #tpu.memory_space<vmem>>, vector<1x128xf32>
      tpu.vector_store %arg8[%c0_44, %c0_45], %74 {strides = array<i32>} : memref<1x128xf32, #tpu.memory_space<vmem>>, vector<1x128xf32>,
      %c0_46 = arith.constant 0 : index
      %c0_47 = arith.constant 0 : index
      %76 = vector.load %arg12[%c0_46, %c0_47] : memref<8x256xf32, #tpu.memory_space<vmem>>, vector<8x256xf32>
      %77 = vector.shape_cast %76 : vector<8x256xf32> to vector<1x8x256xf32>
      %cst_48 = arith.constant dense<0.000000e+00> : vector<1xf32>
      %78 = vector.multi_reduction <add>, %77, %cst_48 [1, 2] : vector<1x8x256xf32> to vector<1xf32>
      %79 = vector.shape_cast %78 : vector<1xf32> to vector<1x1x1xf32>
      %80 = vector.extract %79[0, 0, 0] : f32 from vector<1x1x1xf32>
      %81 = vector.broadcast %80 : f32 to vector<1x128xf32>
      %c0_49 = arith.constant 0 : index
      %c0_50 = arith.constant 0 : index
      %82 = vector.load %arg9[%c0_49, %c0_50] : memref<1x128xf32, #tpu.memory_space<vmem>>, vector<1x128xf32>
      tpu.vector_store %arg9[%c0_49, %c0_50], %81 {strides = array<i32>} : memref<1x128xf32, #tpu.memory_space<vmem>>, vector<1x128xf32>,
      %c0_51 = arith.constant 0 : index
      %c0_52 = arith.constant 0 : index
      %83 = vector.load %arg13[%c0_51, %c0_52] : memref<8x256xf32, #tpu.memory_space<vmem>>, vector<8x256xf32>
      %84 = vector.shape_cast %83 : vector<8x256xf32> to vector<1x8x256xf32>
      %cst_53 = arith.constant dense<0.000000e+00> : vector<1xf32>
      %85 = vector.multi_reduction <add>, %84, %cst_53 [1, 2] : vector<1x8x256xf32> to vector<1xf32>
      %86 = vector.shape_cast %85 : vector<1xf32> to vector<1x1x1xf32>
      %87 = vector.extract %86[0, 0, 0] : f32 from vector<1x1x1xf32>
      %88 = vector.broadcast %87 : f32 to vector<1x128xf32>
      %c0_54 = arith.constant 0 : index
      %c0_55 = arith.constant 0 : index
      %89 = vector.load %arg10[%c0_54, %c0_55] : memref<1x128xf32, #tpu.memory_space<vmem>>, vector<1x128xf32>
      tpu.vector_store %arg10[%c0_54, %c0_55], %88 {strides = array<i32>} : memref<1x128xf32, #tpu.memory_space<vmem>>, vector<1x128xf32>,
    } else {
    }
    return
  }
  func.func @transform_0(%arg0: i32, %arg1: i32) -> (i32, i32, i32) {
    %c0_i32 = arith.constant 0 : i32
    %c0_i32_0 = arith.constant 0 : i32
    return %arg0, %c0_i32, %arg1 : i32, i32, i32
  }
  func.func @transform_1(%arg0: i32, %arg1: i32) -> (i32, i32, i32) {
    %c0_i32 = arith.constant 0 : i32
    %c0_i32_0 = arith.constant 0 : i32
    return %arg0, %c0_i32, %arg1 : i32, i32, i32
  }
  func.func @transform_2(%arg0: i32, %arg1: i32) -> (i32, i32) {
    %c0_i32 = arith.constant 0 : i32
    %c0_i32_0 = arith.constant 0 : i32
    %c0_i32_1 = arith.constant 0 : i32
    return %c0_i32, %c0_i32_0 : i32, i32
  }
  func.func @transform_3(%arg0: i32, %arg1: i32) -> (i32, i32) {
    %c0_i32 = arith.constant 0 : i32
    %c0_i32_0 = arith.constant 0 : i32
    %c0_i32_1 = arith.constant 0 : i32
    return %c0_i32, %c0_i32_0 : i32, i32
  }
  func.func @transform_4(%arg0: i32, %arg1: i32) -> (i32, i32) {
    %c0_i32 = arith.constant 0 : i32
    %c0_i32_0 = arith.constant 0 : i32
    %c0_i32_1 = arith.constant 0 : i32
    return %c0_i32, %c0_i32_0 : i32, i32
  }
  func.func @transform_5(%arg0: i32, %arg1: i32) -> (i32, i32) {
    %c0_i32 = arith.constant 0 : i32
    %c0_i32_0 = arith.constant 0 : i32
    %c0_i32_1 = arith.constant 0 : i32
    return %c0_i32, %c0_i32_0 : i32, i32
  }
  func.func @transform_6(%arg0: i32, %arg1: i32) -> (i32, i32) {
    %c0_i32 = arith.constant 0 : i32
    %c0_i32_0 = arith.constant 0 : i32
    return %c0_i32, %arg0 : i32, i32
  }
  func.func @transform_7(%arg0: i32, %arg1: i32) -> (i32, i32) {
    %c0_i32 = arith.constant 0 : i32
    %c0_i32_0 = arith.constant 0 : i32
    return %c0_i32, %arg0 : i32, i32
  }
  func.func @transform_8(%arg0: i32, %arg1: i32) -> (i32, i32) {
    %c0_i32 = arith.constant 0 : i32
    %c0_i32_0 = arith.constant 0 : i32
    return %c0_i32, %arg0 : i32, i32
  }
}

</mosaic_0001>

<llo_original>
// kernel: model_with_loss.1
$region0: #{model_with_loss.1}
  #allocation0 [shape = 'u32[]', space=smem, size = 0x4, offset = 0x4, fixed_abs, tag = 'smem constant byte address 0x4 - core index']
  #allocation1 [shape = 'u32[144,128]{1,0:T(1,128)}', space=vmem, size = 0x12000, scoped, tag = 'internal scratch']
  #allocation2 [shape = 'f32[8,256]{1,0:T(8,128)}', space=vmem, size = 0x2000, scoped, tag = 'scratch operand']
  #allocation3 [shape = 'f32[8,256]{1,0:T(8,128)}', space=vmem, size = 0x2000, scoped, tag = 'scratch operand']
  #allocation4 [shape = 'f32[8,256]{1,0:T(8,128)}', space=vmem, size = 0x2000, scoped, tag = 'scratch operand']
  %s0 = inlined_call_operand.vmem [shape: f32[2,4,256], index: 0, kind: input, shape index: {}]
  %s1 = inlined_call_operand.vmem [shape: f32[2,8,256], index: 1, kind: input, shape index: {}]
  %s2 = inlined_call_operand.vmem [shape: f32[32,4], index: 2, kind: input, shape index: {}]
  %s3 = inlined_call_operand.vmem [shape: f32[32,1], index: 3, kind: input, shape index: {}]
  %s4 = inlined_call_operand.vmem [shape: f32[8,32], index: 4, kind: input, shape index: {}]
  %s5 = inlined_call_operand.vmem [shape: f32[8,1], index: 5, kind: input, shape index: {}]
  %s6 = inlined_call_operand.vmem [shape: f32[1,256], index: 6, kind: output, shape index: {0}]
  %s7 = inlined_call_operand.vmem [shape: f32[1,256], index: 7, kind: output, shape index: {1}]
  %s8 = inlined_call_operand.vmem [shape: f32[1,256], index: 8, kind: output, shape index: {2}]
  %9 = xla_tuple %s6, %s7, %s8
  %s10 = sld [smem:[#allocation0]]
  $region81: #{model_with_loss.1} parent=0
    _
  %s12 = ssub.s32 1, %s10
  %s13 = scalar_select 0, %s12, %s10
  loop: start=0, step=1, limit=4
  $region2: #{model_with_loss.1} parent=0 // loop_pre_header
    _
  $region3: #{model_with_loss.1} parent=0 // loop_header
    %s15 = sphi 0, %s19
    %p16 = scmp.ge.s32.totalorder %s15, 4
    %s22 = sphi 0, %s34
    %s23 = sphi 0, %s30
    %s24 = sphi 0, %s22
    %s25 = sphi 0, %s23
    %s26 = sphi 0, %s24
    %s27 = sphi 0, %s25
    %s39 = sphi 0, %s41
    %s42 = sphi 0, %s39
    %s43 = sphi 0, %s42
    %s59 = sphi 0, %s43
    %s67 = sphi 0, %s69
    %s70 = sphi 0, %s67
    %s71 = sphi 0, %s70
    %s87 = sphi 0, %s71
    %s91 = sphi 0, %s91
    %s93 = sphi 0, %s91
    %s94 = sphi 0, %s93
    %s108 = sphi 0, %s94
    %s112 = sphi 0, %s112
    %s114 = sphi 0, %s112
    %s115 = sphi 0, %s114
    %s129 = sphi 0, %s115
    %s133 = sphi 0, %s133
    %s135 = sphi 0, %s133
    %s136 = sphi 0, %s135
    %s150 = sphi 0, %s136
    %s154 = sphi 0, %s154
    %s156 = sphi 0, %s154
    %s157 = sphi 0, %s156
    %s171 = sphi 0, %s157
    %s177 = sphi 0, %s179
    %s180 = sphi 0, %s177
    %s181 = sphi 0, %s180
    %s197 = sphi 0, %s181
    %s203 = sphi 0, %s205
    %s206 = sphi 0, %s203
    %s207 = sphi 0, %s206
    %s223 = sphi 0, %s207
    %s229 = sphi 0, %s231
    %s232 = sphi 0, %s229
    %s233 = sphi 0, %s232
    %s249 = sphi 0, %s233
  $region4: #{model_with_loss.1} parent=0 // loop_header_branch
    %18 = sbr.rel (%p16) target = $region8
  $region5: #{model_with_loss.1} parent=0 // loop_body
    %s20 = ssub.s32 %s15, 1
    %s21 = ssub.s32 %s15, 2
    %s28 = sadd.s32 1, %s23
    %p29 = scmp.ge.s32.totalorder %s28, 1
    %s30 = scalar_select %p29, 0, %s28
    %s31 = sadd.s32 1, %s22
    %s32 = scalar_select %p29, %s31, %s22
    %p33 = scmp.ge.s32.totalorder %s32, 2
    %s34 = scalar_select %p33, 0, %s32
    %s35 = ssub.s32 %s22, %s34
    %s36 = ssub.s32 %s23, %s30
    %s37 = sor.u32 %s35, %s36
    %p38 = scmp.eq.s32.totalorder %s37, 0
    %s40 = sadd.s32 %s39, 1
    %s41 = scalar_select %p38, %s39, %s40
    %p44 = pneg %p38
    %p45 = scmp.eq.s32.totalorder %s15, 1
    %p46 = por %p44, %p45
    %p47 = scmp.ne.s32.totalorder %s39, %s42
    %p48 = scmp.eq.s32.totalorder %s15, 0
    %p49 = por %p47, %p48
    %p50 = scmp.ne.s32.totalorder %s39, %s42
    %p51 = scmp.eq.s32.totalorder %s20, 1
    %p52 = por %p50, %p51
    %p53 = scmp.ne.s32.totalorder %s42, %s43
    %p54 = scmp.eq.s32.totalorder %s20, 0
    %p55 = por %p53, %p54
    %p56 = scmp.ne.s32.totalorder %s42, %s43
    %p57 = scmp.eq.s32.totalorder %s21, 1
    %p58 = por %p56, %p57
    %p60 = scmp.ne.s32.totalorder %s43, %s59
    %p61 = scmp.eq.s32.totalorder %s21, 0
    %p62 = por %p60, %p61
    %s63 = ssub.s32 %s22, %s34
    %s64 = ssub.s32 %s23, %s30
    %s65 = sor.u32 %s63, %s64
    %p66 = scmp.eq.s32.totalorder %s65, 0
    %s68 = sadd.s32 %s67, 1
    %s69 = scalar_select %p66, %s67, %s68
    %p72 = pneg %p66
    %p73 = scmp.eq.s32.totalorder %s15, 1
    %p74 = por %p72, %p73
    %p75 = scmp.ne.s32.totalorder %s67, %s70
    %p76 = scmp.eq.s32.totalorder %s15, 0
    %p77 = por %p75, %p76
    %p78 = scmp.ne.s32.totalorder %s67, %s70
    %p79 = scmp.eq.s32.totalorder %s20, 1
    %p80 = por %p78, %p79
    %p81 = scmp.ne.s32.totalorder %s70, %s71
    %p82 = scmp.eq.s32.totalorder %s20, 0
    %p83 = por %p81, %p82
    %p84 = scmp.ne.s32.totalorder %s70, %s71
    %p85 = scmp.eq.s32.totalorder %s21, 1
    %p86 = por %p84, %p85
    %p88 = scmp.ne.s32.totalorder %s71, %s87
    %p89 = scmp.eq.s32.totalorder %s21, 0
    %p90 = por %p88, %p89
    %s92 = sadd.s32 %s91, 1
    %p95 = scmp.eq.s32.totalorder %s15, 1
    %p96 = scmp.ne.s32.totalorder %s91, %s93
    %p97 = scmp.eq.s32.totalorder %s15, 0
    %p98 = por %p96, %p97
    %p99 = scmp.ne.s32.totalorder %s91, %s93
    %p100 = scmp.eq.s32.totalorder %s20, 1
    %p101 = por %p99, %p100
    %p102 = scmp.ne.s32.totalorder %s93, %s94
    %p103 = scmp.eq.s32.totalorder %s20, 0
    %p104 = por %p102, %p103
    %p105 = scmp.ne.s32.totalorder %s93, %s94
    %p106 = scmp.eq.s32.totalorder %s21, 1
    %p107 = por %p105, %p106
    %p109 = scmp.ne.s32.totalorder %s94, %s108
    %p110 = scmp.eq.s32.totalorder %s21, 0
    %p111 = por %p109, %p110
    %s113 = sadd.s32 %s112, 1
    %p116 = scmp.eq.s32.totalorder %s15, 1
    %p117 = scmp.ne.s32.totalorder %s112, %s114
    %p118 = scmp.eq.s32.totalorder %s15, 0
    %p119 = por %p117, %p118
    %p120 = scmp.ne.s32.totalorder %s112, %s114
    %p121 = scmp.eq.s32.totalorder %s20, 1
    %p122 = por %p120, %p121
    %p123 = scmp.ne.s32.totalorder %s114, %s115
    %p124 = scmp.eq.s32.totalorder %s20, 0
    %p125 = por %p123, %p124
    %p126 = scmp.ne.s32.totalorder %s114, %s115
    %p127 = scmp.eq.s32.totalorder %s21, 1
    %p128 = por %p126, %p127
    %p130 = scmp.ne.s32.totalorder %s115, %s129
    %p131 = scmp.eq.s32.totalorder %s21, 0
    %p132 = por %p130, %p131
    %s134 = sadd.s32 %s133, 1
    %p137 = scmp.eq.s32.totalorder %s15, 1
    %p138 = scmp.ne.s32.totalorder %s133, %s135
    %p139 = scmp.eq.s32.totalorder %s15, 0
    %p140 = por %p138, %p139
    %p141 = scmp.ne.s32.totalorder %s133, %s135
    %p142 = scmp.eq.s32.totalorder %s20, 1
    %p143 = por %p141, %p142
    %p144 = scmp.ne.s32.totalorder %s135, %s136
    %p145 = scmp.eq.s32.totalorder %s20, 0
    %p146 = por %p144, %p145
    %p147 = scmp.ne.s32.totalorder %s135, %s136
    %p148 = scmp.eq.s32.totalorder %s21, 1
    %p149 = por %p147, %p148
    %p151 = scmp.ne.s32.totalorder %s136, %s150
    %p152 = scmp.eq.s32.totalorder %s21, 0
    %p153 = por %p151, %p152
    %s155 = sadd.s32 %s154, 1
    %p158 = scmp.eq.s32.totalorder %s15, 1
    %p159 = scmp.ne.s32.totalorder %s154, %s156
    %p160 = scmp.eq.s32.totalorder %s15, 0
    %p161 = por %p159, %p160
    %p162 = scmp.ne.s32.totalorder %s154, %s156
    %p163 = scmp.eq.s32.totalorder %s20, 1
    %p164 = por %p162, %p163
    %p165 = scmp.ne.s32.totalorder %s156, %s157
    %p166 = scmp.eq.s32.totalorder %s20, 0
    %p167 = por %p165, %p166
    %p168 = scmp.ne.s32.totalorder %s156, %s157
    %p169 = scmp.eq.s32.totalorder %s21, 1
    %p170 = por %p168, %p169
    %p172 = scmp.ne.s32.totalorder %s157, %s171
    %p173 = scmp.eq.s32.totalorder %s21, 0
    %p174 = por %p172, %p173
    %s175 = ssub.s32 %s22, %s34
    %p176 = scmp.eq.s32.totalorder %s175, 0
    %s178 = sadd.s32 %s177, 1
    %s179 = scalar_select %p176, %s177, %s178
    %p182 = pneg %p176
    %p183 = scmp.eq.s32.totalorder %s15, 1
    %p184 = por %p182, %p183
    %p185 = scmp.ne.s32.totalorder %s177, %s180
    %p186 = scmp.eq.s32.totalorder %s15, 0
    %p187 = por %p185, %p186
    %p188 = scmp.ne.s32.totalorder %s177, %s180
    %p189 = scmp.eq.s32.totalorder %s20, 1
    %p190 = por %p188, %p189
    %p191 = scmp.ne.s32.totalorder %s180, %s181
    %p192 = scmp.eq.s32.totalorder %s20, 0
    %p193 = por %p191, %p192
    %p194 = scmp.ne.s32.totalorder %s180, %s181
    %p195 = scmp.eq.s32.totalorder %s21, 1
    %p196 = por %p194, %p195
    %p198 = scmp.ne.s32.totalorder %s181, %s197
    %p199 = scmp.eq.s32.totalorder %s21, 0
    %p200 = por %p198, %p199
    %s201 = ssub.s32 %s22, %s34
    %p202 = scmp.eq.s32.totalorder %s201, 0
    %s204 = sadd.s32 %s203, 1
    %s205 = scalar_select %p202, %s203, %s204
    %p208 = pneg %p202
    %p209 = scmp.eq.s32.totalorder %s15, 1
    %p210 = por %p208, %p209
    %p211 = scmp.ne.s32.totalorder %s203, %s206
    %p212 = scmp.eq.s32.totalorder %s15, 0
    %p213 = por %p211, %p212
    %p214 = scmp.ne.s32.totalorder %s203, %s206
    %p215 = scmp.eq.s32.totalorder %s20, 1
    %p216 = por %p214, %p215
    %p217 = scmp.ne.s32.totalorder %s206, %s207
    %p218 = scmp.eq.s32.totalorder %s20, 0
    %p219 = por %p217, %p218
    %p220 = scmp.ne.s32.totalorder %s206, %s207
    %p221 = scmp.eq.s32.totalorder %s21, 1
    %p222 = por %p220, %p221
    %p224 = scmp.ne.s32.totalorder %s207, %s223
    %p225 = scmp.eq.s32.totalorder %s21, 0
    %p226 = por %p224, %p225
    %s227 = ssub.s32 %s22, %s34
    %p228 = scmp.eq.s32.totalorder %s227, 0
    %s230 = sadd.s32 %s229, 1
    %s231 = scalar_select %p228, %s229, %s230
    %p234 = pneg %p228
    %p235 = scmp.eq.s32.totalorder %s15, 1
    %p236 = por %p234, %p235
    %p237 = scmp.ne.s32.totalorder %s229, %s232
    %p238 = scmp.eq.s32.totalorder %s15, 0
    %p239 = por %p237, %p238
    %p240 = scmp.ne.s32.totalorder %s229, %s232
    %p241 = scmp.eq.s32.totalorder %s20, 1
    %p242 = por %p240, %p241
    %p243 = scmp.ne.s32.totalorder %s232, %s233
    %p244 = scmp.eq.s32.totalorder %s20, 0
    %p245 = por %p243, %p244
    %p246 = scmp.ne.s32.totalorder %s232, %s233
    %p247 = scmp.eq.s32.totalorder %s21, 1
    %p248 = por %p246, %p247
    %p250 = scmp.ne.s32.totalorder %s233, %s249
    %p251 = scmp.eq.s32.totalorder %s21, 0
    %p252 = por %p250, %p251
    %p253 = scmp.le.s32.totalorder 1, %s15
    %p254 = scmp.lt.s32.totalorder %s15, 3
    %p255 = pnand %p253, %p254
    %p256 = pneg %p255
    // Predicated region
    $region9: #{model_with_loss.1} parent=5 // pred_check
      _
    $region10: #{model_with_loss.1} parent=5 // pred_check_branch
      %258 = sbr.rel (%p255) target = $region12
    $region11: #{model_with_loss.1} parent=5 // pred_region
      %s259 = ssub.s32 %s15, 1
      // Predicated region
      $region13: #{model_with_loss.1} parent=11 // pred_check
        %p260 = pneg %p104
      $region14: #{model_with_loss.1} parent=11 // pred_check_branch
        %262 = sbr.rel (%p260) target = $region16
      $region15: #{model_with_loss.1} parent=11 // pred_region
        _
      $region16: #{model_with_loss.1} parent=11 // pred_fallthru
        _
      // Predicated region
      $region17: #{model_with_loss.1} parent=11 // pred_check
        %p263 = pneg %p125
      $region18: #{model_with_loss.1} parent=11 // pred_check_branch
        %265 = sbr.rel (%p263) target = $region20
      $region19: #{model_with_loss.1} parent=11 // pred_region
        _
      $region20: #{model_with_loss.1} parent=11 // pred_fallthru
        _
      // Predicated region
      $region21: #{model_with_loss.1} parent=11 // pred_check
        %p266 = pneg %p146
      $region22: #{model_with_loss.1} parent=11 // pred_check_branch
        %268 = sbr.rel (%p266) target = $region24
      $region23: #{model_with_loss.1} parent=11 // pred_region
        _
      $region24: #{model_with_loss.1} parent=11 // pred_fallthru
        _
      // Predicated region
      $region25: #{model_with_loss.1} parent=11 // pred_check
        %p269 = pneg %p167
      $region26: #{model_with_loss.1} parent=11 // pred_check_branch
        %271 = sbr.rel (%p269) target = $region28
      $region27: #{model_with_loss.1} parent=11 // pred_region
        _
      $region28: #{model_with_loss.1} parent=11 // pred_fallthru
        _
    $region12: #{model_with_loss.1} parent=5 // pred_fallthru
      _
    %p272 = scmp.lt.s32.totalorder %s15, 2
    // Predicated region
    $region29: #{model_with_loss.1} parent=5 // pred_check
      %p273 = pneg %p272
    $region30: #{model_with_loss.1} parent=5 // pred_check_branch
      %275 = sbr.rel (%p273) target = $region32
    $region31: #{model_with_loss.1} parent=5 // pred_region
      // Predicated region
      $region33: #{model_with_loss.1} parent=31 // pred_check
        %p276 = pneg %p49
      $region34: #{model_with_loss.1} parent=31 // pred_check_branch
        %278 = sbr.rel (%p276) target = $region36
      $region35: #{model_with_loss.1} parent=31 // pred_region
        %s279 = smul.u32 2, %s23
        %p280 = scmp.lt.s32.totalorder %s22, 1
        %s281 = scalar_select %p280, %s22, 1
        %p282 = scmp.lt.s32.totalorder %s279, 1
        %s283 = scalar_select %p282, %s279, 1
        %s284 = smul.addr %s281, 2
        %s285 = sadd.s32 %s283, %s284
        %s286 = smul.addr %s285, 4
        %s287 = scalar_lea.vmem %s0, %s286
        %s288 = smul.u32 2, %s23
      $region36: #{model_with_loss.1} parent=31 // pred_fallthru
        _
      // Predicated region
      $region37: #{model_with_loss.1} parent=31 // pred_check
        %p289 = pneg %p77
      $region38: #{model_with_loss.1} parent=31 // pred_check_branch
        %291 = sbr.rel (%p289) target = $region40
      $region39: #{model_with_loss.1} parent=31 // pred_region
        %s292 = smul.u32 2, %s23
        %p293 = scmp.lt.s32.totalorder %s22, 1
        %s294 = scalar_select %p293, %s22, 1
        %p295 = scmp.lt.s32.totalorder %s292, 1
        %s296 = scalar_select %p295, %s292, 1
        %s297 = smul.addr %s294, 2
        %s298 = sadd.s32 %s296, %s297
        %s299 = smul.addr %s298, 8
        %s300 = scalar_lea.vmem %s1, %s299
        %s301 = smul.u32 2, %s23
      $region40: #{model_with_loss.1} parent=31 // pred_fallthru
        _
    $region32: #{model_with_loss.1} parent=5 // pred_fallthru
      _
    %p302 = scmp.le.s32.totalorder 1, %s15
    %p303 = scmp.lt.s32.totalorder %s15, 3
    %p304 = pnand %p302, %p303
    %p305 = pneg %p304
    // Predicated region
    $region41: #{model_with_loss.1} parent=5 // pred_check
      _
    $region42: #{model_with_loss.1} parent=5 // pred_check_branch
      %307 = sbr.rel (%p304) target = $region44
    $region43: #{model_with_loss.1} parent=5 // pred_region
      %s308 = ssub.s32 %s15, 1
      %s309 = smul.u32 2, %s25
      %p310 = scmp.lt.s32.totalorder %s24, 1
      %s311 = scalar_select %p310, %s24, 1
      %p312 = scmp.lt.s32.totalorder %s309, 1
      %s313 = scalar_select %p312, %s309, 1
      %s314 = smul.addr %s311, 2
      %s315 = sadd.s32 %s313, %s314
      %s316 = smul.addr %s315, 4
      %s317 = scalar_lea.vmem %s0, %s316
      %p318 = pneg %p55
      %p319 = pneg %p52
      %s320 = smul.u32 2, %s25
      %p321 = scmp.lt.s32.totalorder %s24, 1
      %s322 = scalar_select %p321, %s24, 1
      %p323 = scmp.lt.s32.totalorder %s320, 1
      %s324 = scalar_select %p323, %s320, 1
      %s325 = smul.addr %s322, 2
      %s326 = sadd.s32 %s324, %s325
      %s327 = smul.addr %s326, 8
      %s328 = scalar_lea.vmem %s1, %s327
      %p329 = pneg %p83
      %p330 = pneg %p80
      %p331 = pneg %p104
      %p332 = pneg %p101
      %p333 = pneg %p125
      %p334 = pneg %p122
      %p335 = pneg %p146
      %p336 = pneg %p143
      %p337 = pneg %p167
      %p338 = pneg %p164
      %p339 = pneg %p193
      %p340 = pneg %p190
      %p341 = scmp.lt.s32.totalorder %s24, 1
      %s342 = scalar_select %p341, %s24, 1
      %s343 = scalar_lea.vmem %s6, %s342
      %p344 = pneg %p219
      %p345 = pneg %p216
      %p346 = scmp.lt.s32.totalorder %s24, 1
      %s347 = scalar_select %p346, %s24, 1
      %s348 = scalar_lea.vmem %s7, %s347
      %p349 = pneg %p245
      %p350 = pneg %p242
      %p351 = scmp.lt.s32.totalorder %s24, 1
      %s352 = scalar_select %p351, %s24, 1
      %s353 = scalar_lea.vmem %s8, %s352
      %s354 = smul.u32 2, %s25
      %p355 = scmp.lt.s32.totalorder %s24, 1
      %s356 = scalar_select %p355, %s24, 1
      %p357 = scmp.lt.s32.totalorder %s354, 1
      %s358 = scalar_select %p357, %s354, 1
      %s359 = smul.addr %s356, 2
      %s360 = sadd.s32 %s358, %s359
      %s361 = smul.addr %s360, 4
      %s362 = scalar_lea.vmem %s0, %s361
      %s363 = smul.u32 2, %s25
      %s364 = smul.u32 2, %s25
      %p365 = scmp.lt.s32.totalorder %s24, 1
      %s366 = scalar_select %p365, %s24, 1
      %p367 = scmp.lt.s32.totalorder %s364, 1
      %s368 = scalar_select %p367, %s364, 1
      %s369 = smul.addr %s366, 2
      %s370 = sadd.s32 %s368, %s369
      %s371 = smul.addr %s370, 8
      %s372 = scalar_lea.vmem %s1, %s371
      %s373 = smul.u32 2, %s25
      %p374 = scmp.lt.s32.totalorder %s24, 1
      %s375 = scalar_select %p374, %s24, 1
      %s376 = scalar_lea.vmem %s6, %s375
      %p377 = scmp.lt.s32.totalorder %s24, 1
      %s378 = scalar_select %p377, %s24, 1
      %s379 = scalar_lea.vmem %s7, %s378
      %p380 = scmp.lt.s32.totalorder %s24, 1
      %s381 = scalar_select %p380, %s24, 1
      %s382 = scalar_lea.vmem %s8, %s381
      %p383 = scmp.eq.s32.totalorder %s25, 0
      // Predicated region
      $region45: #{model_with_loss.1} parent=43 // pred_check
        %p384 = pneg %p383
      $region46: #{model_with_loss.1} parent=43 // pred_check_branch
        %386 = sbr.rel (%p384) target = $region48
      $region47: #{model_with_loss.1} parent=43 // pred_region
        %387 = vst [vmem:[#allocation2] sm:$0xff] 0.0
        %388 = vst [vmem:[#allocation2 + $0x8] sm:$0xff] 0.0
        %389 = vst [vmem:[#allocation3] sm:$0xff] 0.0
        %390 = vst [vmem:[#allocation3 + $0x8] sm:$0xff] 0.0
        %391 = vst [vmem:[#allocation4] sm:$0xff] 0.0
        %392 = vst [vmem:[#allocation4 + $0x8] sm:$0xff] 0.0
      $region48: #{model_with_loss.1} parent=43 // pred_fallthru
        _
      %v393 = vld [vmem:[%s362] sm:$0xff]
      %v394 = vld [vmem:[%s2] sm:$0xff]
      %v395 = vld [vmem:[%s2 + $0x8] sm:$0xff]
      %v396 = vld [vmem:[%s2 + $0x10] sm:$0xff]
      %v397 = vld [vmem:[%s2 + $0x18] sm:$0xff]
      %v398 = vld [vmem:[%s3] sm:$0xff]
      %v399 = vld [vmem:[%s3 + $0x8] sm:$0xff]
      %v400 = vld [vmem:[%s3 + $0x10] sm:$0xff]
      %v401 = vld [vmem:[%s3 + $0x18] sm:$0xff]
      %403 = vset.pattern.permute.xlu0 0
      %404 = vperm.xlu0 %403, %v398
      %v405 = vpop.permute.xlu0 %404
      %408 = vset.pattern.permute.xlu0 0
      %409 = vperm.xlu0 %408, %v399
      %v410 = vpop.permute.xlu0 %409
      %413 = vset.pattern.permute.xlu0 0
      %414 = vperm.xlu0 %413, %v400
      %v415 = vpop.permute.xlu0 %414
      %418 = vset.pattern.permute.xlu0 0
      %419 = vperm.xlu0 %418, %v401
      %v420 = vpop.permute.xlu0 %419
      %v423 = vcombine.high %v393, %v393
      %vm424 = vcmask 31744
      %v426 = vsel %vm424, %v394, 0
      %v429 = vsel %vm424, %v395, 0
      %v432 = vsel %vm424, %v396, 0
      %v435 = vsel %vm424, %v397, 0
      %vm437 = vcmask 1043456
      %v438 = vsel %vm437, %v393, 0
      %v440 = vsel %vm437, %v423, 0
      %442 = vmatprep.subr.mxu0 0.0
      %443 = vmatpush1.msra.mxu0 0.0
      %444 = vmatprep.subr.mxu0 0.0
      %445 = vmatpush1.msra.mxu0 0.0
      %446 = vmatprep.subr.mxu0 0.0
      %447 = vmatpush1.msra.mxu0 0.0
      %448 = vmatprep.subr.mxu0 0.0
      %449 = vmatpush1.msra.mxu0 0.0
      %450 = vmatprep.subr.mxu0 0.0
      %451 = vmatpush1.msra.mxu0 0.0
      %452 = vmatprep.subr.mxu0 0.0
      %453 = vmatpush1.msra.mxu0 0.0
      %454 = vmatprep.subr.mxu0 0.0
      %455 = vmatpush1.msra.mxu0 0.0
      %456 = vmatprep.subr.mxu0 0.0
      %457 = vmatpush1.msra.mxu0 0.0
      %458 = vmatprep.subr.mxu0 0.0
      %459 = vmatpush1.msra.mxu0 0.0
      %460 = vmatprep.subr.mxu0 0.0
      %461 = vmatpush1.msra.mxu0 0.0
      %462 = vmatprep.subr.mxu0 0.0
      %463 = vmatpush1.msra.mxu0 0.0
      %464 = vmatprep.subr.mxu0 0.0
      %465 = vmatpush1.msra.mxu0 0.0
      %466 = vmatprep.subr.mxu0 0.0
      %467 = vmatpush1.msra.mxu0 0.0
      %468 = vmatprep.subr.mxu0 0.0
      %469 = vmatpush1.msra.mxu0 0.0
      %470 = vmatprep.subr.mxu0 0.0
      %471 = vmatpush1.msra.mxu0 0.0
      %472 = vmatprep.subr.mxu0 %v440
      %473 = vmatpush1.msra.mxu0 %v438
      %474 = vmatprep.subr.mxu0 0.0
      %475 = vmatpush2.msra.mxu0 0.0
      %476 = vmatprep.subr.mxu0 0.0
      %477 = vmatpush2.msra.mxu0 0.0
      %478 = vmatprep.subr.mxu0 0.0
      %479 = vmatpush2.msra.mxu0 0.0
      %480 = vmatprep.subr.mxu0 0.0
      %481 = vmatpush2.msra.mxu0 0.0
      %482 = vmatprep.subr.mxu0 0.0
      %483 = vmatpush2.msra.mxu0 0.0
      %484 = vmatprep.subr.mxu0 0.0
      %485 = vmatpush2.msra.mxu0 0.0
      %486 = vmatprep.subr.mxu0 0.0
      %487 = vmatpush2.msra.mxu0 0.0
      %488 = vmatprep.subr.mxu0 0.0
      %489 = vmatpush2.msra.mxu0 0.0
      %490 = vmatprep.subr.mxu0 0.0
      %491 = vmatpush2.msra.mxu0 0.0
      %492 = vmatprep.subr.mxu0 0.0
      %493 = vmatpush2.msra.mxu0 0.0
      %494 = vmatprep.subr.mxu0 0.0
      %495 = vmatpush2.msra.mxu0 0.0
      %496 = vmatprep.subr.mxu0 0.0
      %497 = vmatpush2.msra.mxu0 0.0
      %498 = vmatprep.subr.mxu0 0.0
      %499 = vmatpush2.msra.mxu0 0.0
      %500 = vmatprep.subr.mxu0 0.0
      %501 = vmatpush2.msra.mxu0 0.0
      %502 = vmatprep.subr.mxu0 0.0
      %503 = vmatpush2.msra.mxu0 0.0
      %504 = vmatprep.subr.mxu0 0.0
      %505 = vmatpush2.msra.mxu0 0.0
      %506 = vmatprep.mubr.f32.mxu0 0.0
      %507 = vmatmul.mubr.f32.gmra.mxu0 %v426
      %v508 = vpop.f32.mrf.mxu0
      %v509 = vadd.f32 %v405, %v508
      %v510 = vpop.f32.mrf.mxu0
      %v511 = vadd.f32 %v405, %v510
      %512 = vmatprep.mubr.f32.mxu0 0.0
      %513 = vmatmul.mubr.f32.gmra.mxu0 %v429
      %v514 = vpop.f32.mrf.mxu0
      %v515 = vadd.f32 %v410, %v514
      %v516 = vpop.f32.mrf.mxu0
      %v517 = vadd.f32 %v410, %v516
      %518 = vmatprep.mubr.f32.mxu0 0.0
      %519 = vmatmul.mubr.f32.gmra.mxu0 %v432
      %v520 = vpop.f32.mrf.mxu0
      %v521 = vadd.f32 %v415, %v520
      %v522 = vpop.f32.mrf.mxu0
      %v523 = vadd.f32 %v415, %v522
      %524 = vmatprep.mubr.f32.mxu0 0.0
      %525 = vmatmul.mubr.f32.gmra.mxu0 %v435
      %v526 = vpop.f32.mrf.mxu0
      %v527 = vadd.f32 %v420, %v526
      %v528 = vpop.f32.mrf.mxu0
      %v529 = vadd.f32 %v420, %v528
      %530 = vdwg.mxu0
      %v531 = vmax.f32 %v509, 0.0
      %v532 = vmax.f32 %v511, 0.0
      %v533 = vmax.f32 %v515, 0.0
      %v534 = vmax.f32 %v517, 0.0
      %v535 = vmax.f32 %v521, 0.0
      %v536 = vmax.f32 %v523, 0.0
      %v537 = vmax.f32 %v527, 0.0
      %v538 = vmax.f32 %v529, 0.0
      %v539 = vld [vmem:[%s4] sm:$0xff]
      %v540 = vld [vmem:[%s5] sm:$0xff]
      %542 = vset.pattern.permute.xlu0 0
      %543 = vperm.xlu0 %542, %v540
      %v544 = vpop.permute.xlu0 %543
      %vm546 = vcmask 261120
      %v548 = vsel %vm546, %v539, 0
      %550 = vmatprep.subr.mxu0 0.0
      %551 = vmatpush1.msra.mxu0 0.0
      %552 = vmatprep.subr.mxu0 0.0
      %553 = vmatpush1.msra.mxu0 0.0
      %554 = vmatprep.subr.mxu0 0.0
      %555 = vmatpush1.msra.mxu0 0.0
      %556 = vmatprep.subr.mxu0 0.0
      %557 = vmatpush1.msra.mxu0 0.0
      %558 = vmatprep.subr.mxu0 0.0
      %559 = vmatpush1.msra.mxu0 0.0
      %560 = vmatprep.subr.mxu0 0.0
      %561 = vmatpush1.msra.mxu0 0.0
      %562 = vmatprep.subr.mxu0 0.0
      %563 = vmatpush1.msra.mxu0 0.0
      %564 = vmatprep.subr.mxu0 0.0
      %565 = vmatpush1.msra.mxu0 0.0
      %566 = vmatprep.subr.mxu0 0.0
      %567 = vmatpush1.msra.mxu0 0.0
      %568 = vmatprep.subr.mxu0 0.0
      %569 = vmatpush1.msra.mxu0 0.0
      %570 = vmatprep.subr.mxu0 0.0
      %571 = vmatpush1.msra.mxu0 0.0
      %572 = vmatprep.subr.mxu0 0.0
      %573 = vmatpush1.msra.mxu0 0.0
      %574 = vmatprep.subr.mxu0 %v538
      %575 = vmatpush1.msra.mxu0 %v537
      %576 = vmatprep.subr.mxu0 %v536
      %577 = vmatpush1.msra.mxu0 %v535
      %578 = vmatprep.subr.mxu0 %v534
      %579 = vmatpush1.msra.mxu0 %v533
      %580 = vmatprep.subr.mxu0 %v532
      %581 = vmatpush1.msra.mxu0 %v531
      %582 = vmatprep.subr.mxu0 0.0
      %583 = vmatpush2.msra.mxu0 0.0
      %584 = vmatprep.subr.mxu0 0.0
      %585 = vmatpush2.msra.mxu0 0.0
      %586 = vmatprep.subr.mxu0 0.0
      %587 = vmatpush2.msra.mxu0 0.0
      %588 = vmatprep.subr.mxu0 0.0
      %589 = vmatpush2.msra.mxu0 0.0
      %590 = vmatprep.subr.mxu0 0.0
      %591 = vmatpush2.msra.mxu0 0.0
      %592 = vmatprep.subr.mxu0 0.0
      %593 = vmatpush2.msra.mxu0 0.0
      %594 = vmatprep.subr.mxu0 0.0
      %595 = vmatpush2.msra.mxu0 0.0
      %596 = vmatprep.subr.mxu0 0.0
      %597 = vmatpush2.msra.mxu0 0.0
      %598 = vmatprep.subr.mxu0 0.0
      %599 = vmatpush2.msra.mxu0 0.0
      %600 = vmatprep.subr.mxu0 0.0
      %601 = vmatpush2.msra.mxu0 0.0
      %602 = vmatprep.subr.mxu0 0.0
      %603 = vmatpush2.msra.mxu0 0.0
      %604 = vmatprep.subr.mxu0 0.0
      %605 = vmatpush2.msra.mxu0 0.0
      %606 = vmatprep.subr.mxu0 0.0
      %607 = vmatpush2.msra.mxu0 0.0
      %608 = vmatprep.subr.mxu0 0.0
      %609 = vmatpush2.msra.mxu0 0.0
      %610 = vmatprep.subr.mxu0 0.0
      %611 = vmatpush2.msra.mxu0 0.0
      %612 = vmatprep.subr.mxu0 0.0
      %613 = vmatpush2.msra.mxu0 0.0
      %614 = vmatprep.mubr.f32.mxu0 0.0
      %615 = vmatmul.mubr.f32.gmra.mxu0 %v548
      %v616 = vpop.f32.mrf.mxu0
      %v617 = vadd.f32 %v544, %v616
      %v618 = vpop.f32.mrf.mxu0
      %v619 = vadd.f32 %v544, %v618
      %620 = vdwg.mxu0
      %v621 = vxor.u32 %v617, 2147483648
      %v622 = vxor.u32 %v619, 2147483648
      %v623 = vmul.f32 %v621, 1.442695
      %v624 = vpow.pop %v623
      %v625 = vmul.f32 %v622, 1.442695
      %v626 = vpow.pop %v625
      %v627 = vadd.f32 %v624, 1.0
      %v628 = vadd.f32 %v626, 1.0
      %v629 = vrcp.pop %v627
      %v630 = vmul.f32 1.0, %v629
      %v631 = vrcp.pop %v628
      %v632 = vmul.f32 1.0, %v631
      %v633 = vmax.f32 %v630, 0.0001
      %v634 = vmax.f32 %v632, 0.0001
      %v635 = vmin.f32 %v633, 0.9999
      %v636 = vmin.f32 %v634, 0.9999
      %v637 = vlog2.pop %v635
      %v638 = vmul.f32 %v637, 0.6931472
      %v639 = vlog2.pop %v636
      %v640 = vmul.f32 %v639, 0.6931472
      %vm641 = vcmp.gt.f32.partialorder %v617, 9.21024
      %vm642 = vcmp.gt.f32.partialorder %v619, 9.21024
      %vm643 = vcmp.lt.f32.partialorder %v617, -9.21024
      %vm644 = vcmp.lt.f32.partialorder %v619, -9.21024
      %v645 = vsub.f32 %v638, %v617
      %v646 = vsub.f32 %v640, %v619
      %v647 = vsel %vm643, -0.000100005, %v645
      %v648 = vsel %vm644, -0.000100005, %v646
      %v649 = vsel %vm641, -9.2103405, %v647
      %v650 = vsel %vm642, -9.2103405, %v648
      %v651 = vld [vmem:[%s372] sm:$0xff]
      %v652 = vld [vmem:[%s372 + $0x8] sm:$0xff]
      %vm653 = vcmp.eq.f32.partialorder %v651, 1.0
      %vm654 = vcmp.eq.f32.partialorder %v652, 1.0
      %v655 = vsel %vm653, 1, 0
      %v656 = vsel %vm654, 1, 0
      %v657 = vcvt.s32.f32 %v655
      %v658 = vcvt.s32.f32 %v656
      %v659 = vsub.f32 1.0, %v657
      %v660 = vsub.f32 1.0, %v658
      %v661 = vsub.f32 1.0, %v651
      %v662 = vsub.f32 1.0, %v652
      %v663 = vmul.f32 %v661, %v661
      %v664 = vmul.f32 %v662, %v662
      %v665 = vmul.f32 %v663, %v663
      %v666 = vmul.f32 %v664, %v664
      %v667 = vsub.f32 1.0, %v635
      %v668 = vsub.f32 1.0, %v636
      %v669 = vld [vmem:[#allocation2] sm:$0xff]
      %v670 = vld [vmem:[#allocation2 + $0x8] sm:$0xff]
      %v671 = vmul.f32 %v667, %v667
      %v672 = vmul.f32 %v668, %v668
      %v673 = vmul.f32 %v638, %v671
      %v674 = vmul.f32 %v640, %v672
      %v675 = vmul.f32 %v673, %v657
      %v676 = vmul.f32 %v674, %v658
      %v677 = vadd.f32 %v669, %v675
      %v678 = vadd.f32 %v670, %v676
      %679 = vst [vmem:[#allocation2] sm:$0xff] %v677
      %680 = vst [vmem:[#allocation2 + $0x8] sm:$0xff] %v678
      %v681 = vld [vmem:[#allocation3] sm:$0xff]
      %v682 = vld [vmem:[#allocation3 + $0x8] sm:$0xff]
      %v683 = vmul.f32 %v635, %v635
      %v684 = vmul.f32 %v636, %v636
      %v685 = vmul.f32 %v649, %v683
      %v686 = vmul.f32 %v650, %v684
      %v687 = vmul.f32 %v685, %v665
      %v688 = vmul.f32 %v686, %v666
      %v689 = vmul.f32 %v687, %v659
      %v690 = vmul.f32 %v688, %v660
      %v691 = vadd.f32 %v681, %v689
      %v692 = vadd.f32 %v682, %v690
      %693 = vst [vmem:[#allocation3] sm:$0xff] %v691
      %694 = vst [vmem:[#allocation3 + $0x8] sm:$0xff] %v692
      %v695 = vld [vmem:[#allocation4] sm:$0xff]
      %v696 = vld [vmem:[#allocation4 + $0x8] sm:$0xff]
      %v697 = vadd.f32 %v695, %v657
      %v698 = vadd.f32 %v696, %v658
      %699 = vst [vmem:[#allocation4] sm:$0xff] %v697
      %700 = vst [vmem:[#allocation4 + $0x8] sm:$0xff] %v698
      // Predicated region
      $region49: #{model_with_loss.1} parent=43 // pred_check
        %p701 = pneg %p383
      $region50: #{model_with_loss.1} parent=43 // pred_check_branch
        %703 = sbr.rel (%p701) target = $region52
      $region51: #{model_with_loss.1} parent=43 // pred_region
        %v704 = vld [vmem:[#allocation2] sm:$0xff]
        %v705 = vld [vmem:[#allocation2 + $0x8] sm:$0xff]
        %v706 = vadd.f32 %v704, %v705
        %707 = vadd.xlane.f32.xlu0 %v706
        %v708 = vpop.xlane.xlu0 %707
        %v709 = vrot.slane %v708, 4
        %v710 = vadd.f32 %v708, %v709
        %v711 = vrot.slane %v710, 2
        %v712 = vadd.f32 %v710, %v711
        %v713 = vrot.slane %v712, 1
        %v714 = vadd.f32 %v712, %v713
        %s715 = vtos %v714
        %v716 = vstv %s715
        %717 = vst [vmem:[%s376] sm:$0x1] %v716
        %v718 = vld [vmem:[#allocation3] sm:$0xff]
        %v719 = vld [vmem:[#allocation3 + $0x8] sm:$0xff]
        %v720 = vadd.f32 %v718, %v719
        %721 = vadd.xlane.f32.xlu0 %v720
        %v722 = vpop.xlane.xlu0 %721
        %v723 = vrot.slane %v722, 4
        %v724 = vadd.f32 %v722, %v723
        %v725 = vrot.slane %v724, 2
        %v726 = vadd.f32 %v724, %v725
        %v727 = vrot.slane %v726, 1
        %v728 = vadd.f32 %v726, %v727
        %s729 = vtos %v728
        %v730 = vstv %s729
        %731 = vst [vmem:[%s379] sm:$0x1] %v730
        %v732 = vld [vmem:[#allocation4] sm:$0xff]
        %v733 = vld [vmem:[#allocation4 + $0x8] sm:$0xff]
        %v734 = vadd.f32 %v732, %v733
        %735 = vadd.xlane.f32.xlu0 %v734
        %v736 = vpop.xlane.xlu0 %735
        %v737 = vrot.slane %v736, 4
        %v738 = vadd.f32 %v736, %v737
        %v739 = vrot.slane %v738, 2
        %v740 = vadd.f32 %v738, %v739
        %v741 = vrot.slane %v740, 1
        %v742 = vadd.f32 %v740, %v741
        %s743 = vtos %v742
        %v744 = vstv %s743
        %745 = vst [vmem:[%s382] sm:$0x1] %v744
      $region52: #{model_with_loss.1} parent=43 // pred_fallthru
        _
      %p746 = scmp.lt.s32.totalorder %s24, 1
      %s747 = scalar_select %p746, %s24, 1
      %s748 = scalar_lea.vmem %s6, %s747
      %p749 = scmp.lt.s32.totalorder %s24, 1
      %s750 = scalar_select %p749, %s24, 1
      %s751 = scalar_lea.vmem %s7, %s750
      %p752 = scmp.lt.s32.totalorder %s24, 1
      %s753 = scalar_select %p752, %s24, 1
      %s754 = scalar_lea.vmem %s8, %s753
      // Predicated region
      $region53: #{model_with_loss.1} parent=43 // pred_check
        %p755 = pneg %p190
      $region54: #{model_with_loss.1} parent=43 // pred_check_branch
        %757 = sbr.rel (%p755) target = $region56
      $region55: #{model_with_loss.1} parent=43 // pred_region
        _
      $region56: #{model_with_loss.1} parent=43 // pred_fallthru
        _
      // Predicated region
      $region57: #{model_with_loss.1} parent=43 // pred_check
        %p758 = pneg %p216
      $region58: #{model_with_loss.1} parent=43 // pred_check_branch
        %760 = sbr.rel (%p758) target = $region60
      $region59: #{model_with_loss.1} parent=43 // pred_region
        _
      $region60: #{model_with_loss.1} parent=43 // pred_fallthru
        _
      // Predicated region
      $region61: #{model_with_loss.1} parent=43 // pred_check
        %p761 = pneg %p242
      $region62: #{model_with_loss.1} parent=43 // pred_check_branch
        %763 = sbr.rel (%p761) target = $region64
      $region63: #{model_with_loss.1} parent=43 // pred_region
        _
      $region64: #{model_with_loss.1} parent=43 // pred_fallthru
        _
    $region44: #{model_with_loss.1} parent=5 // pred_fallthru
      _
    %p764 = scmp.le.s32.totalorder 2, %s15
    // Predicated region
    $region65: #{model_with_loss.1} parent=5 // pred_check
      %p765 = pneg %p764
    $region66: #{model_with_loss.1} parent=5 // pred_check_branch
      %767 = sbr.rel (%p765) target = $region68
    $region67: #{model_with_loss.1} parent=5 // pred_region
      %s768 = ssub.s32 %s15, 2
      // Predicated region
      $region69: #{model_with_loss.1} parent=67 // pred_check
        %p769 = pneg %p196
      $region70: #{model_with_loss.1} parent=67 // pred_check_branch
        %771 = sbr.rel (%p769) target = $region72
      $region71: #{model_with_loss.1} parent=67 // pred_region
        %p772 = scmp.lt.s32.totalorder %s26, 1
        %s773 = scalar_select %p772, %s26, 1
        %s774 = scalar_lea.vmem %s6, %s773
      $region72: #{model_with_loss.1} parent=67 // pred_fallthru
        _
      // Predicated region
      $region73: #{model_with_loss.1} parent=67 // pred_check
        %p775 = pneg %p222
      $region74: #{model_with_loss.1} parent=67 // pred_check_branch
        %777 = sbr.rel (%p775) target = $region76
      $region75: #{model_with_loss.1} parent=67 // pred_region
        %p778 = scmp.lt.s32.totalorder %s26, 1
        %s779 = scalar_select %p778, %s26, 1
        %s780 = scalar_lea.vmem %s7, %s779
      $region76: #{model_with_loss.1} parent=67 // pred_fallthru
        _
      // Predicated region
      $region77: #{model_with_loss.1} parent=67 // pred_check
        %p781 = pneg %p248
      $region78: #{model_with_loss.1} parent=67 // pred_check_branch
        %783 = sbr.rel (%p781) target = $region80
      $region79: #{model_with_loss.1} parent=67 // pred_region
        %p784 = scmp.lt.s32.totalorder %s26, 1
        %s785 = scalar_select %p784, %s26, 1
        %s786 = scalar_lea.vmem %s8, %s785
      $region80: #{model_with_loss.1} parent=67 // pred_fallthru
        _
    $region68: #{model_with_loss.1} parent=5 // pred_fallthru
      _
  $region6: #{model_with_loss.1} parent=0 // loop_footer
    %s19 = sadd.s32 1, %s15
  $region7: #{model_with_loss.1} parent=0 // loop_footer_branch
    %14 = sbr.rel target = $region3
  $region8: #{model_with_loss.1} parent=0 // loop_exit
    _

</llo_original>
